<compile_context>
chip_gen: v6e
topology: v6e:2x2x1
jax: 0.10.0
libtpu: 0.0.40
codegen_flags: <defaults>
</compile_context>

<pallas_src>
import functools

import jax
import jax.numpy as jnp
from jax import lax
from jax.experimental import pallas as pl
from jax.experimental.pallas import tpu as pltpu

ALPHA = 1.0
GAMMA = 2.0
XENT = 0.1


def _round_up(x, m):
    return ((x + m - 1) // m) * m


def _focal_cosine_kernel(logits_ref, tgt_ref, out_ref, acc_ref, *, n_rows, tile_b):
    i = pl.program_id(0)

    @pl.when(i == 0)
    def _init():
        acc_ref[...] = jnp.zeros_like(acc_ref)

    logits = logits_ref[...].astype(jnp.float32)           # (TILE_B, C)
    tgt = tgt_ref[...]                                      # (TILE_B, 1) int32
    tb, c = logits.shape

    # one-hot(target) mask built in-kernel (VPU compare against lane iota)
    cls = lax.broadcasted_iota(jnp.int32, (tb, c), 1)
    onehot_mask = cls == tgt                                # (TILE_B, C) bool

    # The only 4 cross-lane reductions needed per tile:
    tgt_logit = jnp.sum(jnp.where(onehot_mask, logits, 0.0),
                        axis=-1, keepdims=True)             # logits[target]
    row_sq = jnp.sum(logits * logits, axis=-1, keepdims=True)
    m = jnp.max(logits, axis=-1, keepdims=True)
    sum_exp = jnp.sum(jnp.exp(logits - m), axis=-1, keepdims=True)

    # cosine term: ||normalize(logits)|| == 1 and ||onehot|| == 1, so
    # cos = logits[target] / max(||logits||, 1e-12)  (matches reference to ~ulp)
    row_norm = jnp.sqrt(row_sq)
    cos = tgt_logit / jnp.maximum(row_norm, 1e-12)
    cosine_loss = 1.0 - cos                                 # (TILE_B, 1)

    # cross_entropy(logits, target, reduction='none') per row
    lse = m + jnp.log(sum_exp)
    ce = lse - tgt_logit                                    # (TILE_B, 1)

    pt = jnp.exp(-ce)
    one_minus_pt = 1.0 - pt
    if float(GAMMA).is_integer():
        w = jnp.ones_like(one_minus_pt)
        for _ in range(int(GAMMA)):
            w = w * one_minus_pt
    else:
        # clamp at 0 (not a tiny epsilon) so fp-rounding negatives are safe
        w = jnp.power(jnp.maximum(one_minus_pt, 0.0), GAMMA)
    focal = ALPHA * w * ce                                  # (TILE_B, 1)

    per_row = cosine_loss + XENT * focal                    # (TILE_B, 1)

    # mask rows past the true batch size (ragged last tile)
    row_idx = i * tile_b + lax.broadcasted_iota(jnp.int32, (tb, 1), 0)
    per_row = jnp.where(row_idx < n_rows, per_row, 0.0)

    acc_ref[...] += jnp.sum(per_row, axis=0, keepdims=True)  # (1, 1)

    @pl.when(i == pl.num_programs(0) - 1)
    def _finalize():
        out_ref[...] = acc_ref[...] * (1.0 / n_rows)


def focal_cosine_loss(logits, target, *, tile_b=None):
    """logits: (B, C) float (f32 or bf16), target: (B,) int -> scalar f32 loss."""
    B, C = logits.shape
    tgt2 = target.astype(jnp.int32).reshape(B, 1)

    itemsize = jnp.dtype(logits.dtype).itemsize
    if tile_b is None:
        # ~4 MiB per logits tile (8 MiB double-buffered) -> safe even under
        # v7x's 64 MiB VMEM, large enough to amortize per-step overhead.
        target_bytes = 4 * 1024 * 1024
        tile_b = max(8, (target_bytes // max(C * itemsize, 1)) // 8 * 8)
        tile_b = min(tile_b, 1024)
    tile_b = max(8, (int(tile_b) // 8) * 8)          # sublane multiple
    tile_b = min(tile_b, _round_up(B, 8))            # don't exceed (padded) batch

    grid = (pl.cdiv(B, tile_b),)
    kernel = functools.partial(_focal_cosine_kernel, n_rows=B, tile_b=tile_b)

    out = pl.pallas_call(
        kernel,
        out_shape=jax.ShapeDtypeStruct((1, 1), jnp.float32),
        grid=grid,
        in_specs=[
            pl.BlockSpec((tile_b, C), lambda i: (i, 0)),
            pl.BlockSpec((tile_b, 1), lambda i: (i, 0)),
        ],
        out_specs=pl.BlockSpec((1, 1), lambda i: (0, 0)),
        scratch_shapes=[pltpu.VMEM((1, 1), jnp.float32)],
        compiler_params=pltpu.CompilerParams(
            dimension_semantics=("arbitrary",),      # reduction into resident acc
            vmem_limit_bytes=32 * 1024 * 1024,
        ),
    )(logits, tgt2)
    return out[0, 0]


def _reference(logits, target):
    """Pure-JAX reference mirroring the PyTorch module (reduction='mean')."""
    logits = logits.astype(jnp.float32)
    C = logits.shape[-1]
    onehot = jax.nn.one_hot(target, C, dtype=jnp.float32)
    ln = logits / jnp.maximum(
        jnp.linalg.norm(logits, axis=-1, keepdims=True), 1e-12)
    cos = jnp.sum(ln * onehot, axis=-1) / jnp.maximum(
        jnp.linalg.norm(ln, axis=-1) * jnp.linalg.norm(onehot, axis=-1), 1e-8)
    cosine_loss = jnp.mean(1.0 - cos)
    lse = jax.scipy.special.logsumexp(logits, axis=-1)
    ce = lse - jnp.take_along_axis(logits, target[:, None], axis=-1)[:, 0]
    pt = jnp.exp(-ce)
    focal = jnp.mean(ALPHA * (1.0 - pt) ** GAMMA * ce)
    return cosine_loss + XENT * focal


if __name__ == "__main__":
    key = jax.random.PRNGKey(0)
    k1, k2 = jax.random.split(key)

    # small primary check
    B, C = 8, 32
    logits = jax.random.normal(k1, (B, C), dtype=jnp.float32)
    target = jax.random.randint(k2, (B,), 0, C, dtype=jnp.int32)
    loss = focal_cosine_loss(logits, target)
    jax.block_until_ready(loss)
    ref = _reference(logits, target)
    assert jnp.allclose(loss, ref, rtol=1e-5, atol=1e-5), (loss, ref)

    # ragged-batch / multi-tile check (exercises accumulation + row masking)
    k3, k4 = jax.random.split(k2)
    B2, C2 = 20, 128
    logits2 = jax.random.normal(k3, (B2, C2), dtype=jnp.float32)
    target2 = jax.random.randint(k4, (B2,), 0, C2, dtype=jnp.int32)
    loss2 = focal_cosine_loss(logits2, target2, tile_b=8)   # grid of 3 tiles
    jax.block_until_ready(loss2)
    ref2 = _reference(logits2, target2)
    assert jnp.allclose(loss2, ref2, rtol=1e-5, atol=1e-5), (loss2, ref2)

    print("KERNEL_OK")
</pallas_src>

<mosaic_0001>
module attributes {stable_mosaic.version = 11 : i64} {
  func.func @_focal_cosine_kernel(%arg0: i32, %arg1: memref<8x32xf32, #tpu.memory_space<vmem>>, %arg2: memref<8x1xi32, #tpu.memory_space<vmem>>, %arg3: memref<1x1xf32, #tpu.memory_space<vmem>>, %arg4: memref<1x1xf32, #tpu.memory_space<vmem>>) attributes {dimension_semantics = [#tpu.dimension_semantics<arbitrary>], iteration_bounds = array<i64: 1>, scalar_prefetch = 0 : i64, scratch_operands = 1 : i64, tpu.core_type = #tpu.core_type<tc>, window_params = [{transform_indices = @transform_0, window_bounds = array<i64: 8, 32>}, {transform_indices = @transform_1, window_bounds = array<i64: 8, 1>}, {pipeline_mode = #tpu.pipeline_mode<synchronous>, transform_indices = @transform_2, window_bounds = array<i64: 1, 1>}]} {
    %c0_i32 = arith.constant 0 : i32
    %0 = arith.cmpi eq, %arg0, %c0_i32 : i32
    %1 = arith.extui %0 : i1 to i32
    %c0_i32_0 = arith.constant 0 : i32
    %2 = arith.cmpi ne, %1, %c0_i32_0 : i32
    scf.if %2 {
      %cst_24 = arith.constant 0.000000e+00 : f32
      %61 = vector.broadcast %cst_24 : f32 to vector<1x1xf32>
      %c0_25 = arith.constant 0 : index
      %c0_26 = arith.constant 0 : index
      %62 = vector.load %arg4[%c0_25, %c0_26] : memref<1x1xf32, #tpu.memory_space<vmem>>, vector<1x1xf32>
      tpu.vector_store %arg4[%c0_25, %c0_26], %61 {strides = array<i32>} : memref<1x1xf32, #tpu.memory_space<vmem>>, vector<1x1xf32>,
    } else {
    }
    %c0 = arith.constant 0 : index
    %c0_1 = arith.constant 0 : index
    %3 = vector.load %arg1[%c0, %c0_1] : memref<8x32xf32, #tpu.memory_space<vmem>>, vector<8x32xf32>
    %c0_2 = arith.constant 0 : index
    %c0_3 = arith.constant 0 : index
    %4 = vector.load %arg2[%c0_2, %c0_3] : memref<8x1xi32, #tpu.memory_space<vmem>>, vector<8x1xi32>
    %5 = tpu.iota {dimensions = array<i32: 1>} : vector<8x32xi32>
    %6 = vector.broadcast %4 : vector<8x1xi32> to vector<8x32xi32>
    %7 = arith.cmpi eq, %5, %6 : vector<8x32xi32>
    %cst = arith.constant 0.000000e+00 : f32
    %8 = vector.broadcast %cst : f32 to vector<8x32xf32>
    %9 = arith.select %7, %3, %8 : vector<8x32xi1>, vector<8x32xf32>
    %cst_4 = arith.constant dense<0.000000e+00> : vector<8xf32>
    %10 = vector.multi_reduction <add>, %9, %cst_4 [1] : vector<8x32xf32> to vector<8xf32>
    %11 = vector.shape_cast %10 : vector<8xf32> to vector<8x1xf32>
    %12 = arith.mulf %3, %3 : vector<8x32xf32>
    %cst_5 = arith.constant dense<0.000000e+00> : vector<8xf32>
    %13 = vector.multi_reduction <add>, %12, %cst_5 [1] : vector<8x32xf32> to vector<8xf32>
    %14 = vector.shape_cast %13 : vector<8xf32> to vector<8x1xf32>
    %cst_6 = arith.constant dense<0xFF800000> : vector<8xf32>
    %15 = vector.multi_reduction <maximumf>, %3, %cst_6 [1] : vector<8x32xf32> to vector<8xf32>
    %16 = vector.shape_cast %15 : vector<8xf32> to vector<8x1xf32>
    %17 = vector.broadcast %16 : vector<8x1xf32> to vector<8x32xf32>
    %18 = arith.subf %3, %17 : vector<8x32xf32>
    %19 = math.exp %18 : vector<8x32xf32>
    %cst_7 = arith.constant dense<0.000000e+00> : vector<8xf32>
    %20 = vector.multi_reduction <add>, %19, %cst_7 [1] : vector<8x32xf32> to vector<8xf32>
    %21 = vector.shape_cast %20 : vector<8xf32> to vector<8x1xf32>
    %22 = math.sqrt %14 : vector<8x1xf32>
    %cst_8 = arith.constant 9.99999996E-13 : f32
    %23 = vector.broadcast %cst_8 : f32 to vector<8x1xf32>
    %24 = arith.maximumf %22, %23 : vector<8x1xf32>
    %25 = arith.divf %11, %24 : vector<8x1xf32>
    %cst_9 = arith.constant 1.000000e+00 : f32
    %26 = vector.broadcast %cst_9 : f32 to vector<8x1xf32>
    %27 = arith.subf %26, %25 : vector<8x1xf32>
    %28 = math.log %21 : vector<8x1xf32>
    %29 = arith.addf %16, %28 : vector<8x1xf32>
    %30 = arith.subf %29, %11 : vector<8x1xf32>
    %cst_10 = arith.constant 0.000000e+00 : f32
    %31 = vector.broadcast %cst_10 : f32 to vector<8x1xf32>
    %32 = arith.subf %31, %30 : vector<8x1xf32>
    %33 = math.exp %32 : vector<8x1xf32>
    %cst_11 = arith.constant 1.000000e+00 : f32
    %34 = vector.broadcast %cst_11 : f32 to vector<8x1xf32>
    %35 = arith.subf %34, %33 : vector<8x1xf32>
    %cst_12 = arith.constant 1.000000e+00 : f32
    %36 = vector.broadcast %cst_12 : f32 to vector<8x1xf32>
    %37 = arith.mulf %36, %35 : vector<8x1xf32>
    %38 = arith.mulf %37, %35 : vector<8x1xf32>
    %cst_13 = arith.constant 1.000000e+00 : f32
    %39 = vector.broadcast %cst_13 : f32 to vector<8x1xf32>
    %40 = arith.mulf %39, %38 : vector<8x1xf32>
    %41 = arith.mulf %40, %30 : vector<8x1xf32>
    %cst_14 = arith.constant 1.000000e-01 : f32
    %42 = vector.broadcast %cst_14 : f32 to vector<8x1xf32>
    %43 = arith.mulf %42, %41 : vector<8x1xf32>
    %44 = arith.addf %27, %43 : vector<8x1xf32>
    %c8_i32 = arith.constant 8 : i32
    %45 = arith.muli %arg0, %c8_i32 : i32
    %46 = tpu.iota {dimensions = array<i32: 0>} : vector<8x1xi32>
    %47 = vector.broadcast %45 : i32 to vector<8x1xi32>
    %48 = arith.addi %47, %46 : vector<8x1xi32>
    %c8_i32_15 = arith.constant 8 : i32
    %49 = vector.broadcast %c8_i32_15 : i32 to vector<8x1xi32>
    %50 = arith.cmpi slt, %48, %49 : vector<8x1xi32>
    %cst_16 = arith.constant 0.000000e+00 : f32
    %51 = vector.broadcast %cst_16 : f32 to vector<8x1xf32>
    %52 = arith.select %50, %44, %51 : vector<8x1xi1>, vector<8x1xf32>
    %c0_17 = arith.constant 0 : index
    %c0_18 = arith.constant 0 : index
    %53 = vector.load %arg4[%c0_17, %c0_18] : memref<1x1xf32, #tpu.memory_space<vmem>>, vector<1x1xf32>
    %cst_19 = arith.constant dense<0.000000e+00> : vector<1xf32>
    %54 = vector.multi_reduction <add>, %52, %cst_19 [0] : vector<8x1xf32> to vector<1xf32>
    %55 = vector.shape_cast %54 : vector<1xf32> to vector<1x1xf32>
    %56 = arith.addf %53, %55 : vector<1x1xf32>
    %c0_20 = arith.constant 0 : index
    %c0_21 = arith.constant 0 : index
    %57 = vector.load %arg4[%c0_20, %c0_21] : memref<1x1xf32, #tpu.memory_space<vmem>>, vector<1x1xf32>
    tpu.vector_store %arg4[%c0_20, %c0_21], %56 {strides = array<i32>} : memref<1x1xf32, #tpu.memory_space<vmem>>, vector<1x1xf32>,
    %c0_i32_22 = arith.constant 0 : i32
    %58 = arith.cmpi eq, %arg0, %c0_i32_22 : i32
    %59 = arith.extui %58 : i1 to i32
    %c0_i32_23 = arith.constant 0 : i32
    %60 = arith.cmpi ne, %59, %c0_i32_23 : i32
    scf.if %60 {
      %c0_24 = arith.constant 0 : index
      %c0_25 = arith.constant 0 : index
      %61 = vector.load %arg4[%c0_24, %c0_25] : memref<1x1xf32, #tpu.memory_space<vmem>>, vector<1x1xf32>
      %cst_26 = arith.constant 1.250000e-01 : f32
      %62 = vector.broadcast %cst_26 : f32 to vector<1x1xf32>
      %63 = arith.mulf %61, %62 : vector<1x1xf32>
      %c0_27 = arith.constant 0 : index
      %c0_28 = arith.constant 0 : index
      %64 = vector.load %arg3[%c0_27, %c0_28] : memref<1x1xf32, #tpu.memory_space<vmem>>, vector<1x1xf32>
      tpu.vector_store %arg3[%c0_27, %c0_28], %63 {strides = array<i32>} : memref<1x1xf32, #tpu.memory_space<vmem>>, vector<1x1xf32>,
    } else {
    }
    return
  }
  func.func @transform_0(%arg0: i32) -> (i32, i32) {
    %c0_i32 = arith.constant 0 : i32
    %c0_i32_0 = arith.constant 0 : i32
    return %arg0, %c0_i32 : i32, i32
  }
  func.func @transform_1(%arg0: i32) -> (i32, i32) {
    %c0_i32 = arith.constant 0 : i32
    %c0_i32_0 = arith.constant 0 : i32
    return %arg0, %c0_i32 : i32, i32
  }
  func.func @transform_2(%arg0: i32) -> (i32, i32) {
    %c0_i32 = arith.constant 0 : i32
    %c0_i32_0 = arith.constant 0 : i32
    %c0_i32_1 = arith.constant 0 : i32
    return %c0_i32, %c0_i32_0 : i32, i32
  }
}

</mosaic_0001>

<llo_original>
// kernel: tpu_custom_call.1
$region0: #{tpu_custom_call.1}
  #allocation0 [shape = 'u32[]', space=smem, size = 0x4, offset = 0x4, fixed_abs, tag = 'smem constant byte address 0x4 - core index']
  #allocation1 [shape = 'u32[144,128]{1,0:T(1,128)}', space=vmem, size = 0x12000, scoped, tag = 'internal scratch']
  #allocation2 [shape = 'f32[1,1]{1,0:T(1,128)}', space=vmem, size = 0x200, scoped, tag = 'scratch operand']
  %s0 = inlined_call_operand.vmem [shape: f32[8,32], index: 0, kind: input, shape index: {}]
  %s1 = inlined_call_operand.vmem [shape: s32[8,1], index: 1, kind: input, shape index: {}]
  %s2 = inlined_call_operand.hbm [shape: f32[1,1], index: 2, kind: output, shape index: {}]
  %s3 = sld [smem:[#allocation0]]
  $region26: #{tpu_custom_call.1} parent=0
    _
  %s5 = ssub.s32 1, %s3
  %s6 = scalar_select 0, %s5, %s3
  $region1: #{tpu_custom_call.1} parent=0
    #allocation3 [shape = 'u8[512]{0}', space=vmem, size = 0x400, scoped, tag = 'output window, operand 0, single buffered']
    #allocation4 [shape = 's32[1]{0}', space=sflag, size = 0x4, scoped, tag = 'scoped memory for tpu_custom_call.1']
    %7 = vsyncpa [#allocation4], 0
    // Predicated region
    $region2: #{tpu_custom_call.1} parent=1 // pred_check
      _
    $region3: #{tpu_custom_call.1} parent=1 // pred_check_branch
      %9 = sbr.rel (0) target = $region5
    $region4: #{tpu_custom_call.1} parent=1 // pred_region
      _
    $region5: #{tpu_custom_call.1} parent=1 // pred_fallthru
      _
    // Predicated region
    $region6: #{tpu_custom_call.1} parent=1 // pred_check
      _
    $region7: #{tpu_custom_call.1} parent=1 // pred_check_branch
      %11 = sbr.rel (0) target = $region9
    $region8: #{tpu_custom_call.1} parent=1 // pred_region
      _
    $region9: #{tpu_custom_call.1} parent=1 // pred_fallthru
      _
    %p12 = scmp.eq.s32.totalorder 0, 0
    // Predicated region
    $region10: #{tpu_custom_call.1} parent=1 // pred_check
      %p13 = pneg %p12
    $region11: #{tpu_custom_call.1} parent=1 // pred_check_branch
      %15 = sbr.rel (%p13) target = $region13
    $region12: #{tpu_custom_call.1} parent=1 // pred_region
      %vm16 = vcmask 0
      %17 = vst.msk [vmem:[#allocation2] sm:$0x1] %vm16, 0.0
    $region13: #{tpu_custom_call.1} parent=1 // pred_fallthru
      _
    %v18 = vld [vmem:[%s0] sm:$0xff]
    %v19 = vld [vmem:[%s1] sm:$0xff]
    %v20 = vlaneseq
    %v21 = vand.u32 %v20, 127
    %22 = vset.pattern.permute.xlu0 0
    %23 = vperm.xlu0 %22, %v19
    %v24 = vpop.permute.xlu0 %23
    %vm25 = vcmp.eq.s32.totalorder %v21, %v24
    %v26 = vsel %vm25, %v18, 0.0
    %vm27 = vcmask 261120
    %v28 = vsel %vm27, %v26, 0.0
    %29 = vadd.xlane.f32.xlu0 %v28
    %v30 = vpop.xlane.xlu0 %29
    %v31 = vmul.f32 %v18, %v18
    %v32 = vsel %vm27, %v31, 0.0
    %33 = vadd.xlane.f32.xlu0 %v32
    %v34 = vpop.xlane.xlu0 %33
    %v35 = vsel %vm27, %v18, -inf
    %36 = vmax.xlane.f32.xlu0 %v35
    %v37 = vpop.xlane.xlu0 %36
    %v38 = vsub.f32 %v18, %v37
    %v39 = vmul.f32 %v38, 1.442695
    %v40 = vpow.pop %v39
    %v41 = vsel %vm27, %v40, 0.0
    %42 = vadd.xlane.f32.xlu0 %v41
    %v43 = vpop.xlane.xlu0 %42
    %v44 = vrsqrt.pop %v34
    %v45 = vmul.f32 %v34, %v44
    %vm46 = vcmp.eq.f32.partialorder %v34, inf
    %v47 = vsel %vm46, %v34, %v45
    %vm48 = vcmp.eq.f32.partialorder %v34, 0.0
    %v49 = vand.u32 %v34, 2147483648
    %v50 = vsel %vm48, %v49, %v47
    %v51 = vmax.f32 %v50, 1e-12
    %v52 = vrcp.pop %v51
    %v53 = vmul.f32 %v30, %v52
    %v54 = vsub.f32 1.0, %v53
    %v55 = vlog2.pop %v43
    %v56 = vmul.f32 %v55, 0.6931472
    %v57 = vadd.f32 %v37, %v56
    %v58 = vsub.f32 %v57, %v30
    %v59 = vsub.f32 0.0, %v58
    %v60 = vmul.f32 %v59, 1.442695
    %v61 = vpow.pop %v60
    %v62 = vsub.f32 1.0, %v61
    %v63 = vmul.f32 %v62, %v62
    %v64 = vmul.f32 %v63, %v58
    %v65 = vmul.f32 %v64, 0.1
    %v66 = vadd.f32 %v54, %v65
    %s67 = smul.u32 0, 8
    %v68 = vlaneseq
    %v69 = vshrl.u32 %v68, 7
    %v70 = vstv %s67
    %v71 = vadd.s32 %v70, %v69
    %vm72 = vcmp.lt.s32.totalorder %v71, 8
    %v73 = vsel %vm72, %v66, 0.0
    %v74 = vld [vmem:[#allocation2] sm:$0x1]
    %v75 = vrot.slane %v73, 4
    %v76 = vadd.f32 %v73, %v75
    %v77 = vrot.slane %v76, 2
    %v78 = vadd.f32 %v76, %v77
    %v79 = vrot.slane %v78, 1
    %v80 = vadd.f32 %v78, %v79
    %v81 = vadd.f32 %v74, %v80
    %vm82 = vcmask 0
    %83 = vst.msk [vmem:[#allocation2] sm:$0x1] %vm82, %v81
    // Predicated region
    $region14: #{tpu_custom_call.1} parent=1 // pred_check
      %p84 = pneg %p12
    $region15: #{tpu_custom_call.1} parent=1 // pred_check_branch
      %86 = sbr.rel (%p84) target = $region17
    $region16: #{tpu_custom_call.1} parent=1 // pred_region
      %v87 = vld [vmem:[#allocation2] sm:$0x1]
      %v88 = vmul.f32 %v87, 0.125
      %89 = vst.msk [vmem:[#allocation3] sm:$0x1] %vm82, %v88
    $region17: #{tpu_custom_call.1} parent=1 // pred_fallthru
      _
    // Predicated region
    $region18: #{tpu_custom_call.1} parent=1 // pred_check
      _
    $region19: #{tpu_custom_call.1} parent=1 // pred_check_branch
      %91 = sbr.rel (0) target = $region21
    $region20: #{tpu_custom_call.1} parent=1 // pred_region
      %s93 = ssub.s32 16, 16
      %94 = vsyncadd [#allocation4], %s93
      %s96 = sshll.u32 [#allocation3], 4
      %s97 = int_to_ptr.vmem [resolvable:$true] %s96
      %99 = dma.vmem_to_hbm [thread:$0]  %s97, 16, %s2, [#allocation4]
    $region21: #{tpu_custom_call.1} parent=1 // pred_fallthru
      _
    // Predicated region
    $region22: #{tpu_custom_call.1} parent=1 // pred_check
      _
    $region23: #{tpu_custom_call.1} parent=1 // pred_check_branch
      %101 = sbr.rel (0) target = $region25
    $region24: #{tpu_custom_call.1} parent=1 // pred_region
      %102 = dma.done [#allocation4], 16
    $region25: #{tpu_custom_call.1} parent=1 // pred_fallthru
      _
    %103 = vsyncpa [#allocation4], 1

</llo_original>
